<compile_context>
chip_gen: v5e
topology: v5e:2x2
jax: 0.10.0
libtpu: 0.0.40
codegen_flags: <defaults>
</compile_context>

<pallas_src>
import functools

import jax
import jax.numpy as jnp
from jax import lax
from jax.experimental import pallas as pl
from jax.experimental.pallas import tpu as pltpu


def _consistency_partials_kernel(wcls_ref, t_ref, s_ref, seg_ref, out_ref, *,
                                 num_classes, eps, hw, needs_mask):
    b = pl.program_id(0)
    ti = pl.program_id(1)

    c = t_ref.shape[1]
    rows = t_ref.shape[2]
    lanes = t_ref.shape[3]

    # Cosine similarity over channels, accumulated one [rows, 128] plane at a
    # time: products in the wire dtype (bf16 stays on the bf16 VPU path on
    # v6e/v7x), sums in f32. Only ~5 planes stay live -> no VMEM spill of a
    # full [C, rows, 128] f32 copy.
    dot = jnp.zeros((rows, lanes), jnp.float32)
    nt2 = jnp.zeros((rows, lanes), jnp.float32)
    ns2 = jnp.zeros((rows, lanes), jnp.float32)
    for ci in range(c):                              # static, unrolled
        tc = t_ref[0, ci]                            # [rows, 128], wire dtype
        sc = s_ref[0, ci]
        dot = dot + (tc * sc).astype(jnp.float32)
        nt2 = nt2 + (tc * tc).astype(jnp.float32)
        ns2 = ns2 + (sc * sc).astype(jnp.float32)
    cos = dot * lax.rsqrt(jnp.maximum(nt2 * ns2, eps * eps))
    loss = 1.0 - cos

    # Class-frequency weight: pure K-way compare+select chain against the
    # SMEM-prefetched per-class table (classes are mutually exclusive).
    # Padding pixels carry seg == num_classes -> match nothing -> weight 0.
    seg = seg_ref[0].astype(jnp.int32)               # [rows, 128]
    weight = jnp.zeros_like(loss)
    for k in range(num_classes):                     # static, small K
        weight = jnp.where(seg == k, wcls_ref[b, k], weight)

    wl = weight * loss
    if needs_mask:
        # Ragged last tile: out-of-bounds sublanes hold unspecified data.
        # Zero both numerator and denominator via select (kills NaN/Inf too).
        r_idx = lax.broadcasted_iota(jnp.int32, (rows, lanes), 0)
        l_idx = lax.broadcasted_iota(jnp.int32, (rows, lanes), 1)
        flat = (ti * rows + r_idx) * lanes + l_idx
        valid = flat < hw
        wl = jnp.where(valid, wl, 0.0)
        weight = jnp.where(valid, weight, 0.0)

    # Lane-dense partials, single (2, 128) store per grid step.
    num_row = jnp.sum(wl, axis=0, keepdims=True)      # [1, 128]
    den_row = jnp.sum(weight, axis=0, keepdims=True)  # [1, 128]
    out_ref[0, 0, :, :] = jnp.concatenate([num_row, den_row], axis=0)


def _vmem_capacity_bytes():
    try:
        return int(pltpu.get_tpu_info().vmem_capacity_bytes)
    except Exception:
        return 64 * 1024 * 1024   # conservative: v7x per-TC physical VMEM


_SUBLANE_PACK = {4: 8, 2: 16, 1: 32}   # rows per (8,128)-equivalent tile


def _choose_tile_rows(s_rows, c, emb_itemsize, seg_itemsize, sub, vmem_cap):
    """Sublane rows per spatial tile.

    Target ~8 MiB of fresh input (t + s + seg blocks) per grid step so the
    ~0.35us fixed per-step overhead is negligible, while the 2x double-buffered
    blocks stay well under the per-core VMEM capacity (64 MiB v7x, 128 MiB
    v5e/v6e).
    """
    bytes_per_row = 128 * (2 * c * emb_itemsize + seg_itemsize)
    budget = min(8 << 20, max(vmem_cap // 5, 1 << 20))
    rows = max(budget // bytes_per_row, sub)
    rows = max((rows // sub) * sub, sub)
    if rows >= s_rows:
        return s_rows   # full spatial extent: legal even if not sub-aligned
    return rows


def consistency_loss(target_emb, source_emb, seg_masks, *, num_classes,
                     loss_factor=0.1, eps=1e-8):
    """target_emb/source_emb: [B, C, H, W]; seg_masks: [B, H, W] int.

    num_classes must be >= max(seg_masks) + 1 (F.one_hot's inferred K); any
    larger value gives an identical result (absent classes select nothing).
    """
    b, c, h, w = target_emb.shape
    hw = h * w

    # Per-class pixel counts are global over H*W: one scatter-add pass on the
    # UNPADDED mask (no [B, HW, K] broadcast-compare).
    seg_flat = seg_masks.reshape(b, hw).astype(jnp.int32)
    counts = jnp.zeros((b, num_classes), jnp.float32).at[
        jnp.arange(b)[:, None], seg_flat].add(1.0)
    w_class = 1.0 - counts / float(hw)                 # weight_factor == 1.0

    # Layout: spatial axis spread over (sublane, lane) -> [B, C, S, 128].
    s_rows = -(-hw // 128)                             # ceil(HW / 128)
    hw128 = s_rows * 128

    # Shrink seg on the wire when cheap & safe (int8 tiles are >= 32 sublanes).
    if num_classes <= 127 and s_rows >= 32:
        seg_wire_dtype = jnp.int8
    else:
        seg_wire_dtype = jnp.int32
    emb_itemsize = jnp.dtype(target_emb.dtype).itemsize
    seg_itemsize = jnp.dtype(seg_wire_dtype).itemsize
    sub = max(_SUBLANE_PACK.get(emb_itemsize, 8),
              _SUBLANE_PACK.get(seg_itemsize, 8))

    vmem_cap = _vmem_capacity_bytes()
    rows = _choose_tile_rows(s_rows, c, emb_itemsize, seg_itemsize, sub,
                             vmem_cap)
    grid_t = -(-s_rows // rows)
    # Megacore (v7x) balance: avoid a single-cell grid when it can be split.
    if b * grid_t < 2 and s_rows > sub:
        half = -(-s_rows // 2)
        rows = -(-half // sub) * sub
        grid_t = -(-s_rows // rows)

    t3 = target_emb.reshape(b, c, hw)
    s3 = source_emb.reshape(b, c, hw)
    seg_w = seg_flat
    if hw128 != hw:
        # TODO(synk): this pad copies the embeddings in HBM; it is only taken
        # when H*W is not a multiple of 128 (lane sliver). Ragged *tiles* are
        # handled in-kernel instead of padding.
        pad = hw128 - hw
        t3 = jnp.pad(t3, ((0, 0), (0, 0), (0, pad)))
        s3 = jnp.pad(s3, ((0, 0), (0, 0), (0, pad)))
        seg_w = jnp.pad(seg_w, ((0, 0), (0, pad)),
                        constant_values=num_classes)   # pad class -> weight 0
    t4 = t3.reshape(b, c, s_rows, 128)
    s4 = s3.reshape(b, c, s_rows, 128)
    seg3 = seg_w.reshape(b, s_rows, 128).astype(seg_wire_dtype)

    needs_mask = grid_t * rows > s_rows                # ragged last tile only

    bytes_per_row = 128 * (2 * c * emb_itemsize + seg_itemsize)
    block_bytes = rows * bytes_per_row
    vmem_limit = int(min(vmem_cap, max(2 * block_bytes + (4 << 20), 16 << 20)))

    kernel = functools.partial(_consistency_partials_kernel,
                               num_classes=num_classes, eps=eps, hw=hw,
                               needs_mask=needs_mask)
    partials = pl.pallas_call(
        kernel,
        out_shape=jax.ShapeDtypeStruct((b, grid_t, 2, 128), jnp.float32),
        grid_spec=pltpu.PrefetchScalarGridSpec(
            num_scalar_prefetch=1,
            grid=(b, grid_t),
            in_specs=[
                pl.BlockSpec((1, c, rows, 128), lambda bi, ti, wc: (bi, 0, ti, 0)),
                pl.BlockSpec((1, c, rows, 128), lambda bi, ti, wc: (bi, 0, ti, 0)),
                pl.BlockSpec((1, rows, 128), lambda bi, ti, wc: (bi, ti, 0)),
            ],
            out_specs=pl.BlockSpec((1, 1, 2, 128),
                                   lambda bi, ti, wc: (bi, ti, 0, 0)),
        ),
        compiler_params=pltpu.CompilerParams(
            dimension_semantics=("parallel", "parallel"),
            vmem_limit_bytes=vmem_limit),
    )(w_class, t4, s4, seg3)

    num = jnp.sum(partials[:, :, 0, :])
    den = jnp.sum(partials[:, :, 1, :])
    return (num / den) * loss_factor


def _reference(target_emb, source_emb, seg_masks, num_classes,
               loss_factor=0.1, eps=1e-8):
    """Pure-JAX port of the PyTorch module (for correctness checking)."""
    dot = jnp.sum(target_emb * source_emb, axis=1)
    nt2 = jnp.sum(target_emb * target_emb, axis=1)
    ns2 = jnp.sum(source_emb * source_emb, axis=1)
    cos = dot * lax.rsqrt(jnp.maximum(nt2 * ns2, eps * eps))
    loss = 1.0 - cos
    onehot = jax.nn.one_hot(seg_masks, num_classes)
    count = onehot.sum((1, 2), keepdims=True)
    h, w = seg_masks.shape[1:]
    weight = (onehot * (1.0 - count / (h * w))).sum(-1)
    return (weight * loss).sum() / weight.sum() * loss_factor


if __name__ == "__main__":
    key = jax.random.PRNGKey(0)
    k1, k2, k3 = jax.random.split(key, 3)

    B, C, H, W = 2, 4, 16, 16
    NUM_CLASSES = 4
    target = jax.random.normal(k1, (B, C, H, W), dtype=jnp.float32)
    source = jax.random.normal(k2, (B, C, H, W), dtype=jnp.float32)
    seg = jax.random.randint(k3, (B, H, W), 0, NUM_CLASSES, dtype=jnp.int32)

    loss_fn = jax.jit(functools.partial(consistency_loss,
                                        num_classes=NUM_CLASSES))
    loss = loss_fn(target, source, seg)
    jax.block_until_ready(loss)

    ref = _reference(target, source, seg, NUM_CLASSES)
    assert bool(jnp.allclose(loss, ref, rtol=1e-5, atol=1e-6)), (loss, ref)
    print("KERNEL_OK")
</pallas_src>

<mosaic_0001>
module attributes {stable_mosaic.version = 11 : i64} {
  func.func @_consistency_partials_kernel(%arg0: i32, %arg1: i32, %arg2: memref<2x4xf32, #tpu.memory_space<smem>>, %arg3: memref<1x4x2x128xf32, #tpu.memory_space<vmem>>, %arg4: memref<1x4x2x128xf32, #tpu.memory_space<vmem>>, %arg5: memref<1x2x128xi32, #tpu.memory_space<vmem>>, %arg6: memref<1x1x2x128xf32, #tpu.memory_space<vmem>>) attributes {dimension_semantics = [#tpu.dimension_semantics<parallel>, #tpu.dimension_semantics<parallel>], iteration_bounds = array<i64: 2, 1>, scalar_prefetch = 1 : i64, scratch_operands = 0 : i64, tpu.core_type = #tpu.core_type<tc>, window_params = [{transform_indices = @transform_0, window_bounds = array<i64: 1, 4, 2, 128>}, {transform_indices = @transform_1, window_bounds = array<i64: 1, 4, 2, 128>}, {transform_indices = @transform_2, window_bounds = array<i64: 1, 2, 128>}, {transform_indices = @transform_3, window_bounds = array<i64: 1, 1, 2, 128>}]} {
    %cst = arith.constant 0.000000e+00 : f32
    %0 = vector.broadcast %cst : f32 to vector<2x128xf32>
    %cst_0 = arith.constant 0.000000e+00 : f32
    %1 = vector.broadcast %cst_0 : f32 to vector<2x128xf32>
    %cst_1 = arith.constant 0.000000e+00 : f32
    %2 = vector.broadcast %cst_1 : f32 to vector<2x128xf32>
    %c0 = arith.constant 0 : index
    %c0_2 = arith.constant 0 : index
    %c0_3 = arith.constant 0 : index
    %c0_4 = arith.constant 0 : index
    %3 = vector.load %arg3[%c0, %c0_2, %c0_3, %c0_4] : memref<1x4x2x128xf32, #tpu.memory_space<vmem>>, vector<1x1x2x128xf32>
    %4 = vector.shape_cast %3 : vector<1x1x2x128xf32> to vector<2x128xf32>
    %c0_5 = arith.constant 0 : index
    %c0_6 = arith.constant 0 : index
    %c0_7 = arith.constant 0 : index
    %c0_8 = arith.constant 0 : index
    %5 = vector.load %arg4[%c0_5, %c0_6, %c0_7, %c0_8] : memref<1x4x2x128xf32, #tpu.memory_space<vmem>>, vector<1x1x2x128xf32>
    %6 = vector.shape_cast %5 : vector<1x1x2x128xf32> to vector<2x128xf32>
    %7 = arith.mulf %4, %6 : vector<2x128xf32>
    %8 = arith.addf %0, %7 : vector<2x128xf32>
    %9 = arith.mulf %4, %4 : vector<2x128xf32>
    %10 = arith.addf %1, %9 : vector<2x128xf32>
    %11 = arith.mulf %6, %6 : vector<2x128xf32>
    %12 = arith.addf %2, %11 : vector<2x128xf32>
    %c0_9 = arith.constant 0 : index
    %c1 = arith.constant 1 : index
    %c0_10 = arith.constant 0 : index
    %c0_11 = arith.constant 0 : index
    %13 = vector.load %arg3[%c0_9, %c1, %c0_10, %c0_11] : memref<1x4x2x128xf32, #tpu.memory_space<vmem>>, vector<1x1x2x128xf32>
    %14 = vector.shape_cast %13 : vector<1x1x2x128xf32> to vector<2x128xf32>
    %c0_12 = arith.constant 0 : index
    %c1_13 = arith.constant 1 : index
    %c0_14 = arith.constant 0 : index
    %c0_15 = arith.constant 0 : index
    %15 = vector.load %arg4[%c0_12, %c1_13, %c0_14, %c0_15] : memref<1x4x2x128xf32, #tpu.memory_space<vmem>>, vector<1x1x2x128xf32>
    %16 = vector.shape_cast %15 : vector<1x1x2x128xf32> to vector<2x128xf32>
    %17 = arith.mulf %14, %16 : vector<2x128xf32>
    %18 = arith.addf %8, %17 : vector<2x128xf32>
    %19 = arith.mulf %14, %14 : vector<2x128xf32>
    %20 = arith.addf %10, %19 : vector<2x128xf32>
    %21 = arith.mulf %16, %16 : vector<2x128xf32>
    %22 = arith.addf %12, %21 : vector<2x128xf32>
    %c0_16 = arith.constant 0 : index
    %c2 = arith.constant 2 : index
    %c0_17 = arith.constant 0 : index
    %c0_18 = arith.constant 0 : index
    %23 = vector.load %arg3[%c0_16, %c2, %c0_17, %c0_18] : memref<1x4x2x128xf32, #tpu.memory_space<vmem>>, vector<1x1x2x128xf32>
    %24 = vector.shape_cast %23 : vector<1x1x2x128xf32> to vector<2x128xf32>
    %c0_19 = arith.constant 0 : index
    %c2_20 = arith.constant 2 : index
    %c0_21 = arith.constant 0 : index
    %c0_22 = arith.constant 0 : index
    %25 = vector.load %arg4[%c0_19, %c2_20, %c0_21, %c0_22] : memref<1x4x2x128xf32, #tpu.memory_space<vmem>>, vector<1x1x2x128xf32>
    %26 = vector.shape_cast %25 : vector<1x1x2x128xf32> to vector<2x128xf32>
    %27 = arith.mulf %24, %26 : vector<2x128xf32>
    %28 = arith.addf %18, %27 : vector<2x128xf32>
    %29 = arith.mulf %24, %24 : vector<2x128xf32>
    %30 = arith.addf %20, %29 : vector<2x128xf32>
    %31 = arith.mulf %26, %26 : vector<2x128xf32>
    %32 = arith.addf %22, %31 : vector<2x128xf32>
    %c0_23 = arith.constant 0 : index
    %c3 = arith.constant 3 : index
    %c0_24 = arith.constant 0 : index
    %c0_25 = arith.constant 0 : index
    %33 = vector.load %arg3[%c0_23, %c3, %c0_24, %c0_25] : memref<1x4x2x128xf32, #tpu.memory_space<vmem>>, vector<1x1x2x128xf32>
    %34 = vector.shape_cast %33 : vector<1x1x2x128xf32> to vector<2x128xf32>
    %c0_26 = arith.constant 0 : index
    %c3_27 = arith.constant 3 : index
    %c0_28 = arith.constant 0 : index
    %c0_29 = arith.constant 0 : index
    %35 = vector.load %arg4[%c0_26, %c3_27, %c0_28, %c0_29] : memref<1x4x2x128xf32, #tpu.memory_space<vmem>>, vector<1x1x2x128xf32>
    %36 = vector.shape_cast %35 : vector<1x1x2x128xf32> to vector<2x128xf32>
    %37 = arith.mulf %34, %36 : vector<2x128xf32>
    %38 = arith.addf %28, %37 : vector<2x128xf32>
    %39 = arith.mulf %34, %34 : vector<2x128xf32>
    %40 = arith.addf %30, %39 : vector<2x128xf32>
    %41 = arith.mulf %36, %36 : vector<2x128xf32>
    %42 = arith.addf %32, %41 : vector<2x128xf32>
    %43 = arith.mulf %40, %42 : vector<2x128xf32>
    %cst_30 = arith.constant 1.000000e-16 : f32
    %44 = vector.broadcast %cst_30 : f32 to vector<2x128xf32>
    %45 = arith.maximumf %43, %44 : vector<2x128xf32>
    %46 = math.rsqrt %45 : vector<2x128xf32>
    %47 = arith.mulf %38, %46 : vector<2x128xf32>
    %cst_31 = arith.constant 1.000000e+00 : f32
    %48 = vector.broadcast %cst_31 : f32 to vector<2x128xf32>
    %49 = arith.subf %48, %47 : vector<2x128xf32>
    %c0_32 = arith.constant 0 : index
    %c0_33 = arith.constant 0 : index
    %c0_34 = arith.constant 0 : index
    %50 = vector.load %arg5[%c0_32, %c0_33, %c0_34] : memref<1x2x128xi32, #tpu.memory_space<vmem>>, vector<1x2x128xi32>
    %51 = vector.shape_cast %50 : vector<1x2x128xi32> to vector<2x128xi32>
    %cst_35 = arith.constant 0.000000e+00 : f32
    %52 = vector.broadcast %cst_35 : f32 to vector<2x128xf32>
    %c0_i32 = arith.constant 0 : i32
    %53 = vector.broadcast %c0_i32 : i32 to vector<2x128xi32>
    %54 = arith.cmpi eq, %51, %53 : vector<2x128xi32>
    %55 = arith.index_cast %arg0 : i32 to index
    %c0_36 = arith.constant 0 : index
    %56 = memref.load %arg2[%55, %c0_36] : memref<2x4xf32, #tpu.memory_space<smem>>
    %57 = vector.broadcast %56 : f32 to vector<2x128xf32>
    %58 = arith.select %54, %57, %52 : vector<2x128xi1>, vector<2x128xf32>
    %c1_i32 = arith.constant 1 : i32
    %59 = vector.broadcast %c1_i32 : i32 to vector<2x128xi32>
    %60 = arith.cmpi eq, %51, %59 : vector<2x128xi32>
    %61 = arith.index_cast %arg0 : i32 to index
    %c1_37 = arith.constant 1 : index
    %62 = memref.load %arg2[%61, %c1_37] : memref<2x4xf32, #tpu.memory_space<smem>>
    %63 = vector.broadcast %62 : f32 to vector<2x128xf32>
    %64 = arith.select %60, %63, %58 : vector<2x128xi1>, vector<2x128xf32>
    %c2_i32 = arith.constant 2 : i32
    %65 = vector.broadcast %c2_i32 : i32 to vector<2x128xi32>
    %66 = arith.cmpi eq, %51, %65 : vector<2x128xi32>
    %67 = arith.index_cast %arg0 : i32 to index
    %c2_38 = arith.constant 2 : index
    %68 = memref.load %arg2[%67, %c2_38] : memref<2x4xf32, #tpu.memory_space<smem>>
    %69 = vector.broadcast %68 : f32 to vector<2x128xf32>
    %70 = arith.select %66, %69, %64 : vector<2x128xi1>, vector<2x128xf32>
    %c3_i32 = arith.constant 3 : i32
    %71 = vector.broadcast %c3_i32 : i32 to vector<2x128xi32>
    %72 = arith.cmpi eq, %51, %71 : vector<2x128xi32>
    %73 = arith.index_cast %arg0 : i32 to index
    %c3_39 = arith.constant 3 : index
    %74 = memref.load %arg2[%73, %c3_39] : memref<2x4xf32, #tpu.memory_space<smem>>
    %75 = vector.broadcast %74 : f32 to vector<2x128xf32>
    %76 = arith.select %72, %75, %70 : vector<2x128xi1>, vector<2x128xf32>
    %77 = arith.mulf %76, %49 : vector<2x128xf32>
    %cst_40 = arith.constant dense<0.000000e+00> : vector<128xf32>
    %78 = vector.multi_reduction <add>, %77, %cst_40 [0] : vector<2x128xf32> to vector<128xf32>
    %79 = vector.shape_cast %78 : vector<128xf32> to vector<1x128xf32>
    %cst_41 = arith.constant dense<0.000000e+00> : vector<128xf32>
    %80 = vector.multi_reduction <add>, %76, %cst_41 [0] : vector<2x128xf32> to vector<128xf32>
    %81 = vector.shape_cast %80 : vector<128xf32> to vector<1x128xf32>
    %82 = tpu.concatenate %79, %81 in 0 : vector<1x128xf32>, vector<1x128xf32> -> vector<2x128xf32>
    %c0_42 = arith.constant 0 : index
    %c0_43 = arith.constant 0 : index
    %c0_44 = arith.constant 0 : index
    %c0_45 = arith.constant 0 : index
    %83 = vector.load %arg6[%c0_42, %c0_43, %c0_44, %c0_45] : memref<1x1x2x128xf32, #tpu.memory_space<vmem>>, vector<1x1x2x128xf32>
    %84 = vector.shape_cast %83 : vector<1x1x2x128xf32> to vector<2x128xf32>
    %85 = vector.shape_cast %82 : vector<2x128xf32> to vector<1x1x2x128xf32>
    tpu.vector_store %arg6[%c0_42, %c0_43, %c0_44, %c0_45], %85 {strides = array<i32>} : memref<1x1x2x128xf32, #tpu.memory_space<vmem>>, vector<1x1x2x128xf32>,
    return
  }
  func.func @transform_0(%arg0: i32, %arg1: i32, %arg2: memref<2x4xf32, #tpu.memory_space<smem>>) -> (i32, i32, i32, i32) {
    %c0_i32 = arith.constant 0 : i32
    %c0_i32_0 = arith.constant 0 : i32
    %c0_i32_1 = arith.constant 0 : i32
    return %arg0, %c0_i32, %arg1, %c0_i32_0 : i32, i32, i32, i32
  }
  func.func @transform_1(%arg0: i32, %arg1: i32, %arg2: memref<2x4xf32, #tpu.memory_space<smem>>) -> (i32, i32, i32, i32) {
    %c0_i32 = arith.constant 0 : i32
    %c0_i32_0 = arith.constant 0 : i32
    %c0_i32_1 = arith.constant 0 : i32
    return %arg0, %c0_i32, %arg1, %c0_i32_0 : i32, i32, i32, i32
  }
  func.func @transform_2(%arg0: i32, %arg1: i32, %arg2: memref<2x4xf32, #tpu.memory_space<smem>>) -> (i32, i32, i32) {
    %c0_i32 = arith.constant 0 : i32
    %c0_i32_0 = arith.constant 0 : i32
    return %arg0, %arg1, %c0_i32 : i32, i32, i32
  }
  func.func @transform_3(%arg0: i32, %arg1: i32, %arg2: memref<2x4xf32, #tpu.memory_space<smem>>) -> (i32, i32, i32, i32) {
    %c0_i32 = arith.constant 0 : i32
    %c0_i32_0 = arith.constant 0 : i32
    %c0_i32_1 = arith.constant 0 : i32
    return %arg0, %arg1, %c0_i32, %c0_i32_0 : i32, i32, i32, i32
  }
}

</mosaic_0001>

<llo_original>
// kernel: consistency_loss.1
$region0: #{consistency_loss.1}
  #allocation0 [shape = 'u32[]', space=smem, size = 0x4, offset = 0x4, fixed_abs, tag = 'smem constant byte address 0x4 - core index']
  #allocation1 [shape = 'u32[72,128]{1,0:T(1,128)}', space=vmem, size = 0x9000, scoped, tag = 'internal scratch']
  #allocation2 [shape = 's32[1]{0}', space=sflag, size = 0x4, scoped, tag = 'scoped memory for consistency_loss.1']
  #allocation3 [shape = 'u8[1024]{0}', space=smem, size = 0x400, scoped, tag = 'prefetched SMEM operand 0']
  %s0 = inlined_call_operand.vmem [shape: f32[2,4], index: 0, kind: input, shape index: {}]
  %s1 = inlined_call_operand.vmem [shape: f32[2,4,2,128], index: 1, kind: input, shape index: {}]
  %s2 = inlined_call_operand.vmem [shape: f32[2,4,2,128], index: 2, kind: input, shape index: {}]
  %s3 = inlined_call_operand.vmem [shape: s32[2,2,128], index: 3, kind: input, shape index: {}]
  %s4 = inlined_call_operand.vmem [shape: f32[2,1,2,128], index: 4, kind: output, shape index: {}]
  %s5 = sld [smem:[#allocation0]]
  $region45: #{consistency_loss.1} parent=0
    _
  %s7 = ssub.s32 1, %s5
  %s8 = scalar_select 0, %s7, %s5
  %s10 = sshll.u32 %s0, 4
  %s11 = int_to_ptr.vmem [resolvable:$true] %s10
  %13 = dma.vmem_to_smem %s11, 32, [#allocation3], [#allocation2]
  %15 = dma.done [#allocation2], 32
  %16 = sfence
  loop: start=0, step=1, limit=4
  $region2: #{consistency_loss.1} parent=0 // loop_pre_header
    _
  $region3: #{consistency_loss.1} parent=0 // loop_header
    %s18 = sphi 0, %s22
    %p19 = scmp.ge.s32.totalorder %s18, 4
    %s25 = sphi 0, %s37
    %s26 = sphi 0, %s33
    %s27 = sphi 0, %s25
    %s28 = sphi 0, %s26
    %s29 = sphi 0, %s27
    %s30 = sphi 0, %s28
    %s42 = sphi 0, %s44
    %s45 = sphi 0, %s42
    %s46 = sphi 0, %s45
    %s62 = sphi 0, %s46
    %s70 = sphi 0, %s72
    %s73 = sphi 0, %s70
    %s74 = sphi 0, %s73
    %s90 = sphi 0, %s74
    %s98 = sphi 0, %s100
    %s101 = sphi 0, %s98
    %s102 = sphi 0, %s101
    %s118 = sphi 0, %s102
    %s126 = sphi 0, %s128
    %s129 = sphi 0, %s126
    %s130 = sphi 0, %s129
    %s146 = sphi 0, %s130
  $region4: #{consistency_loss.1} parent=0 // loop_header_branch
    %21 = sbr.rel (%p19) target = $region8
  $region5: #{consistency_loss.1} parent=0 // loop_body
    %s23 = ssub.s32 %s18, 1
    %s24 = ssub.s32 %s18, 2
    %s31 = sadd.s32 1, %s26
    %p32 = scmp.ge.s32.totalorder %s31, 1
    %s33 = scalar_select %p32, 0, %s31
    %s34 = sadd.s32 1, %s25
    %s35 = scalar_select %p32, %s34, %s25
    %p36 = scmp.ge.s32.totalorder %s35, 2
    %s37 = scalar_select %p36, 0, %s35
    %s38 = ssub.s32 %s25, %s37
    %s39 = ssub.s32 %s26, %s33
    %s40 = sor.u32 %s38, %s39
    %p41 = scmp.eq.s32.totalorder %s40, 0
    %s43 = sadd.s32 %s42, 1
    %s44 = scalar_select %p41, %s42, %s43
    %p47 = pneg %p41
    %p48 = scmp.eq.s32.totalorder %s18, 1
    %p49 = por %p47, %p48
    %p50 = scmp.ne.s32.totalorder %s42, %s45
    %p51 = scmp.eq.s32.totalorder %s18, 0
    %p52 = por %p50, %p51
    %p53 = scmp.ne.s32.totalorder %s42, %s45
    %p54 = scmp.eq.s32.totalorder %s23, 1
    %p55 = por %p53, %p54
    %p56 = scmp.ne.s32.totalorder %s45, %s46
    %p57 = scmp.eq.s32.totalorder %s23, 0
    %p58 = por %p56, %p57
    %p59 = scmp.ne.s32.totalorder %s45, %s46
    %p60 = scmp.eq.s32.totalorder %s24, 1
    %p61 = por %p59, %p60
    %p63 = scmp.ne.s32.totalorder %s46, %s62
    %p64 = scmp.eq.s32.totalorder %s24, 0
    %p65 = por %p63, %p64
    %s66 = ssub.s32 %s25, %s37
    %s67 = ssub.s32 %s26, %s33
    %s68 = sor.u32 %s66, %s67
    %p69 = scmp.eq.s32.totalorder %s68, 0
    %s71 = sadd.s32 %s70, 1
    %s72 = scalar_select %p69, %s70, %s71
    %p75 = pneg %p69
    %p76 = scmp.eq.s32.totalorder %s18, 1
    %p77 = por %p75, %p76
    %p78 = scmp.ne.s32.totalorder %s70, %s73
    %p79 = scmp.eq.s32.totalorder %s18, 0
    %p80 = por %p78, %p79
    %p81 = scmp.ne.s32.totalorder %s70, %s73
    %p82 = scmp.eq.s32.totalorder %s23, 1
    %p83 = por %p81, %p82
    %p84 = scmp.ne.s32.totalorder %s73, %s74
    %p85 = scmp.eq.s32.totalorder %s23, 0
    %p86 = por %p84, %p85
    %p87 = scmp.ne.s32.totalorder %s73, %s74
    %p88 = scmp.eq.s32.totalorder %s24, 1
    %p89 = por %p87, %p88
    %p91 = scmp.ne.s32.totalorder %s74, %s90
    %p92 = scmp.eq.s32.totalorder %s24, 0
    %p93 = por %p91, %p92
    %s94 = ssub.s32 %s25, %s37
    %s95 = ssub.s32 %s26, %s33
    %s96 = sor.u32 %s94, %s95
    %p97 = scmp.eq.s32.totalorder %s96, 0
    %s99 = sadd.s32 %s98, 1
    %s100 = scalar_select %p97, %s98, %s99
    %p103 = pneg %p97
    %p104 = scmp.eq.s32.totalorder %s18, 1
    %p105 = por %p103, %p104
    %p106 = scmp.ne.s32.totalorder %s98, %s101
    %p107 = scmp.eq.s32.totalorder %s18, 0
    %p108 = por %p106, %p107
    %p109 = scmp.ne.s32.totalorder %s98, %s101
    %p110 = scmp.eq.s32.totalorder %s23, 1
    %p111 = por %p109, %p110
    %p112 = scmp.ne.s32.totalorder %s101, %s102
    %p113 = scmp.eq.s32.totalorder %s23, 0
    %p114 = por %p112, %p113
    %p115 = scmp.ne.s32.totalorder %s101, %s102
    %p116 = scmp.eq.s32.totalorder %s24, 1
    %p117 = por %p115, %p116
    %p119 = scmp.ne.s32.totalorder %s102, %s118
    %p120 = scmp.eq.s32.totalorder %s24, 0
    %p121 = por %p119, %p120
    %s122 = ssub.s32 %s25, %s37
    %s123 = ssub.s32 %s26, %s33
    %s124 = sor.u32 %s122, %s123
    %p125 = scmp.eq.s32.totalorder %s124, 0
    %s127 = sadd.s32 %s126, 1
    %s128 = scalar_select %p125, %s126, %s127
    %p131 = pneg %p125
    %p132 = scmp.eq.s32.totalorder %s18, 1
    %p133 = por %p131, %p132
    %p134 = scmp.ne.s32.totalorder %s126, %s129
    %p135 = scmp.eq.s32.totalorder %s18, 0
    %p136 = por %p134, %p135
    %p137 = scmp.ne.s32.totalorder %s126, %s129
    %p138 = scmp.eq.s32.totalorder %s23, 1
    %p139 = por %p137, %p138
    %p140 = scmp.ne.s32.totalorder %s129, %s130
    %p141 = scmp.eq.s32.totalorder %s23, 0
    %p142 = por %p140, %p141
    %p143 = scmp.ne.s32.totalorder %s129, %s130
    %p144 = scmp.eq.s32.totalorder %s24, 1
    %p145 = por %p143, %p144
    %p147 = scmp.ne.s32.totalorder %s130, %s146
    %p148 = scmp.eq.s32.totalorder %s24, 0
    %p149 = por %p147, %p148
    %p150 = scmp.le.s32.totalorder 1, %s18
    %p151 = scmp.lt.s32.totalorder %s18, 3
    %p152 = pnand %p150, %p151
    %p153 = pneg %p152
    // Predicated region
    $region9: #{consistency_loss.1} parent=5 // pred_check
      _
    $region10: #{consistency_loss.1} parent=5 // pred_check_branch
      %155 = sbr.rel (%p152) target = $region12
    $region11: #{consistency_loss.1} parent=5 // pred_region
      %s156 = ssub.s32 %s18, 1
    $region12: #{consistency_loss.1} parent=5 // pred_fallthru
      _
    %p157 = scmp.lt.s32.totalorder %s18, 2
    // Predicated region
    $region13: #{consistency_loss.1} parent=5 // pred_check
      %p158 = pneg %p157
    $region14: #{consistency_loss.1} parent=5 // pred_check_branch
      %160 = sbr.rel (%p158) target = $region16
    $region15: #{consistency_loss.1} parent=5 // pred_region
      // Predicated region
      $region17: #{consistency_loss.1} parent=15 // pred_check
        %p161 = pneg %p52
      $region18: #{consistency_loss.1} parent=15 // pred_check_branch
        %163 = sbr.rel (%p161) target = $region20
      $region19: #{consistency_loss.1} parent=15 // pred_region
        %p164 = scmp.lt.s32.totalorder %s25, 1
        %s165 = scalar_select %p164, %s25, 1
        %p166 = scmp.lt.s32.totalorder %s26, 0
        %s167 = scalar_select %p166, %s26, 0
        %s168 = smul.addr %s165, 4
        %s169 = sadd.s32 %s167, %s168
        %s170 = smul.addr %s169, 2
        %s171 = scalar_lea.vmem %s1, %s170
      $region20: #{consistency_loss.1} parent=15 // pred_fallthru
        _
      // Predicated region
      $region21: #{consistency_loss.1} parent=15 // pred_check
        %p172 = pneg %p80
      $region22: #{consistency_loss.1} parent=15 // pred_check_branch
        %174 = sbr.rel (%p172) target = $region24
      $region23: #{consistency_loss.1} parent=15 // pred_region
        %p175 = scmp.lt.s32.totalorder %s25, 1
        %s176 = scalar_select %p175, %s25, 1
        %p177 = scmp.lt.s32.totalorder %s26, 0
        %s178 = scalar_select %p177, %s26, 0
        %s179 = smul.addr %s176, 4
        %s180 = sadd.s32 %s178, %s179
        %s181 = smul.addr %s180, 2
        %s182 = scalar_lea.vmem %s2, %s181
      $region24: #{consistency_loss.1} parent=15 // pred_fallthru
        _
      // Predicated region
      $region25: #{consistency_loss.1} parent=15 // pred_check
        %p183 = pneg %p108
      $region26: #{consistency_loss.1} parent=15 // pred_check_branch
        %185 = sbr.rel (%p183) target = $region28
      $region27: #{consistency_loss.1} parent=15 // pred_region
        %p186 = scmp.lt.s32.totalorder %s25, 1
        %s187 = scalar_select %p186, %s25, 1
        %p188 = scmp.lt.s32.totalorder %s26, 0
        %s189 = scalar_select %p188, %s26, 0
        %s190 = sadd.s32 %s189, %s187
        %s191 = smul.addr %s190, 2
        %s192 = scalar_lea.vmem %s3, %s191
      $region28: #{consistency_loss.1} parent=15 // pred_fallthru
        _
    $region16: #{consistency_loss.1} parent=5 // pred_fallthru
      _
    %p193 = scmp.le.s32.totalorder 1, %s18
    %p194 = scmp.lt.s32.totalorder %s18, 3
    %p195 = pnand %p193, %p194
    %p196 = pneg %p195
    // Predicated region
    $region29: #{consistency_loss.1} parent=5 // pred_check
      _
    $region30: #{consistency_loss.1} parent=5 // pred_check_branch
      %198 = sbr.rel (%p195) target = $region32
    $region31: #{consistency_loss.1} parent=5 // pred_region
      %s199 = ssub.s32 %s18, 1
      %p200 = scmp.lt.s32.totalorder %s27, 1
      %s201 = scalar_select %p200, %s27, 1
      %p202 = scmp.lt.s32.totalorder %s28, 0
      %s203 = scalar_select %p202, %s28, 0
      %s204 = smul.addr %s201, 4
      %s205 = sadd.s32 %s203, %s204
      %s206 = smul.addr %s205, 2
      %s207 = scalar_lea.vmem %s1, %s206
      %p208 = pneg %p58
      %p209 = pneg %p55
      %p210 = scmp.lt.s32.totalorder %s27, 1
      %s211 = scalar_select %p210, %s27, 1
      %p212 = scmp.lt.s32.totalorder %s28, 0
      %s213 = scalar_select %p212, %s28, 0
      %s214 = smul.addr %s211, 4
      %s215 = sadd.s32 %s213, %s214
      %s216 = smul.addr %s215, 2
      %s217 = scalar_lea.vmem %s2, %s216
      %p218 = pneg %p86
      %p219 = pneg %p83
      %p220 = scmp.lt.s32.totalorder %s27, 1
      %s221 = scalar_select %p220, %s27, 1
      %p222 = scmp.lt.s32.totalorder %s28, 0
      %s223 = scalar_select %p222, %s28, 0
      %s224 = sadd.s32 %s223, %s221
      %s225 = smul.addr %s224, 2
      %s226 = scalar_lea.vmem %s3, %s225
      %p227 = pneg %p114
      %p228 = pneg %p111
      %p229 = pneg %p142
      %p230 = pneg %p139
      %p231 = scmp.lt.s32.totalorder %s27, 1
      %s232 = scalar_select %p231, %s27, 1
      %p233 = scmp.lt.s32.totalorder %s28, 0
      %s234 = scalar_select %p233, %s28, 0
      %s235 = sadd.s32 %s234, %s232
      %s236 = smul.addr %s235, 2
      %s237 = scalar_lea.vmem %s4, %s236
      %p238 = scmp.lt.s32.totalorder %s27, 1
      %s239 = scalar_select %p238, %s27, 1
      %p240 = scmp.lt.s32.totalorder %s28, 0
      %s241 = scalar_select %p240, %s28, 0
      %s242 = smul.addr %s239, 4
      %s243 = sadd.s32 %s241, %s242
      %s244 = smul.addr %s243, 2
      %s245 = scalar_lea.vmem %s1, %s244
      %p246 = scmp.lt.s32.totalorder %s27, 1
      %s247 = scalar_select %p246, %s27, 1
      %p248 = scmp.lt.s32.totalorder %s28, 0
      %s249 = scalar_select %p248, %s28, 0
      %s250 = smul.addr %s247, 4
      %s251 = sadd.s32 %s249, %s250
      %s252 = smul.addr %s251, 2
      %s253 = scalar_lea.vmem %s2, %s252
      %p254 = scmp.lt.s32.totalorder %s27, 1
      %s255 = scalar_select %p254, %s27, 1
      %p256 = scmp.lt.s32.totalorder %s28, 0
      %s257 = scalar_select %p256, %s28, 0
      %s258 = sadd.s32 %s257, %s255
      %s259 = smul.addr %s258, 2
      %s260 = scalar_lea.vmem %s3, %s259
      %p261 = scmp.lt.s32.totalorder %s27, 1
      %s262 = scalar_select %p261, %s27, 1
      %p263 = scmp.lt.s32.totalorder %s28, 0
      %s264 = scalar_select %p263, %s28, 0
      %s265 = sadd.s32 %s264, %s262
      %s266 = smul.addr %s265, 2
      %s267 = scalar_lea.vmem %s4, %s266
      %v268 = vld [vmem:[%s245] sm:$0x3]
      %v269 = vld [vmem:[%s253] sm:$0x3]
      %v270 = vmul.f32 %v268, %v269
      %v271 = vadd.f32 %v270, 0.0
      %v272 = vmul.f32 %v268, %v268
      %v273 = vadd.f32 %v272, 0.0
      %v274 = vmul.f32 %v269, %v269
      %v275 = vadd.f32 %v274, 0.0
      %s276 = scalar_lea.vmem %s245, 2
      %v277 = vld [vmem:[%s276] sm:$0x3]
      %s278 = scalar_lea.vmem %s253, 2
      %v279 = vld [vmem:[%s278] sm:$0x3]
      %v280 = vmul.f32 %v277, %v279
      %v281 = vadd.f32 %v271, %v280
      %v282 = vmul.f32 %v277, %v277
      %v283 = vadd.f32 %v273, %v282
      %v284 = vmul.f32 %v279, %v279
      %v285 = vadd.f32 %v275, %v284
      %s286 = scalar_lea.vmem %s245, 4
      %v287 = vld [vmem:[%s286] sm:$0x3]
      %s288 = scalar_lea.vmem %s253, 4
      %v289 = vld [vmem:[%s288] sm:$0x3]
      %v290 = vmul.f32 %v287, %v289
      %v291 = vadd.f32 %v281, %v290
      %v292 = vmul.f32 %v287, %v287
      %v293 = vadd.f32 %v283, %v292
      %v294 = vmul.f32 %v289, %v289
      %v295 = vadd.f32 %v285, %v294
      %s296 = scalar_lea.vmem %s245, 6
      %v297 = vld [vmem:[%s296] sm:$0x3]
      %s298 = scalar_lea.vmem %s253, 6
      %v299 = vld [vmem:[%s298] sm:$0x3]
      %v300 = vmul.f32 %v297, %v299
      %v301 = vadd.f32 %v291, %v300
      %v302 = vmul.f32 %v297, %v297
      %v303 = vadd.f32 %v293, %v302
      %v304 = vmul.f32 %v299, %v299
      %v305 = vadd.f32 %v295, %v304
      %v306 = vmul.f32 %v303, %v305
      %v307 = vmax.f32 %v306, 1e-16
      %v308 = vrsqrt.pop %v307
      %v309 = vmul.f32 %v308, %v307
      %v310 = vmul.f32 %v309, %v308
      %v311 = vmul.f32 0.5, %v310
      %v312 = vsub.f32 1.5, %v311
      %v313 = vmul.f32 %v308, %v312
      %vm314 = vweird.f32 %v307
      %vm315 = vweird.f32 %v308
      %vm316 = vmor %vm314, %vm315
      %v317 = vsel %vm316, %v308, %v313
      %v318 = vmul.f32 %v301, %v317
      %v319 = vsub.f32 1.0, %v318
      %v320 = vld [vmem:[%s260] sm:$0x3]
      %vm321 = vcmp.eq.s32.totalorder %v320, 0
      %s322 = smul.u32 %s27, 128
      %s323 = sld [smem:[#allocation3 + %s322]]
      %v324 = vstv %s323
      %v325 = vsel %vm321, %v324, 0.0
      %vm326 = vcmp.eq.s32.totalorder %v320, 1
      %s327 = sadd.s32 %s322, 1
      %s328 = sld [smem:[#allocation3 + %s327]]
      %v329 = vstv %s328
      %v330 = vsel %vm326, %v329, %v325
      %vm331 = vcmp.eq.s32.totalorder %v320, 2
      %s332 = sadd.s32 %s322, 2
      %s333 = sld [smem:[#allocation3 + %s332]]
      %v334 = vstv %s333
      %v335 = vsel %vm331, %v334, %v330
      %vm336 = vcmp.eq.s32.totalorder %v320, 3
      %s337 = sadd.s32 %s322, 3
      %s338 = sld [smem:[#allocation3 + %s337]]
      %v339 = vstv %s338
      %v340 = vsel %vm336, %v339, %v335
      %v341 = vmul.f32 %v340, %v319
      %vm342 = vcmask 1041408
      %v343 = vsel %vm342, %v341, 0.0
      %v344 = vrot.slane %v343, 4
      %v345 = vadd.f32 %v343, %v344
      %v346 = vrot.slane %v345, 2
      %v347 = vadd.f32 %v345, %v346
      %v348 = vrot.slane %v347, 1
      %v349 = vadd.f32 %v347, %v348
      %v350 = vsel %vm342, %v340, 0.0
      %v351 = vrot.slane %v350, 4
      %v352 = vadd.f32 %v350, %v351
      %v353 = vrot.slane %v352, 2
      %v354 = vadd.f32 %v352, %v353
      %v355 = vrot.slane %v354, 1
      %v356 = vadd.f32 %v354, %v355
      %vm357 = vcmask 1040384
      %v358 = vsel %vm357, %v349, %v356
      %359 = vst [vmem:[%s267] sm:$0x3] %v358
      %p360 = scmp.lt.s32.totalorder %s27, 1
      %s361 = scalar_select %p360, %s27, 1
      %p362 = scmp.lt.s32.totalorder %s28, 0
      %s363 = scalar_select %p362, %s28, 0
      %s364 = sadd.s32 %s363, %s361
      %s365 = smul.addr %s364, 2
      %s366 = scalar_lea.vmem %s4, %s365
      // Predicated region
      $region33: #{consistency_loss.1} parent=31 // pred_check
        %p367 = pneg %p139
      $region34: #{consistency_loss.1} parent=31 // pred_check_branch
        %369 = sbr.rel (%p367) target = $region36
      $region35: #{consistency_loss.1} parent=31 // pred_region
        _
      $region36: #{consistency_loss.1} parent=31 // pred_fallthru
        _
    $region32: #{consistency_loss.1} parent=5 // pred_fallthru
      _
    %p370 = scmp.le.s32.totalorder 2, %s18
    // Predicated region
    $region37: #{consistency_loss.1} parent=5 // pred_check
      %p371 = pneg %p370
    $region38: #{consistency_loss.1} parent=5 // pred_check_branch
      %373 = sbr.rel (%p371) target = $region40
    $region39: #{consistency_loss.1} parent=5 // pred_region
      %s374 = ssub.s32 %s18, 2
      // Predicated region
      $region41: #{consistency_loss.1} parent=39 // pred_check
        %p375 = pneg %p145
      $region42: #{consistency_loss.1} parent=39 // pred_check_branch
        %377 = sbr.rel (%p375) target = $region44
      $region43: #{consistency_loss.1} parent=39 // pred_region
        %p378 = scmp.lt.s32.totalorder %s29, 1
        %s379 = scalar_select %p378, %s29, 1
        %p380 = scmp.lt.s32.totalorder %s30, 0
        %s381 = scalar_select %p380, %s30, 0
        %s382 = sadd.s32 %s381, %s379
        %s383 = smul.addr %s382, 2
        %s384 = scalar_lea.vmem %s4, %s383
      $region44: #{consistency_loss.1} parent=39 // pred_fallthru
        _
    $region40: #{consistency_loss.1} parent=5 // pred_fallthru
      _
  $region6: #{consistency_loss.1} parent=0 // loop_footer
    %s22 = sadd.s32 1, %s18
  $region7: #{consistency_loss.1} parent=0 // loop_footer_branch
    %17 = sbr.rel target = $region3
  $region8: #{consistency_loss.1} parent=0 // loop_exit
    _

</llo_original>
